<compile_context>
chip_gen: v6e
topology: v6e:2x2x1
jax: 0.10.0
libtpu: 0.0.40
codegen_flags: <defaults>
</compile_context>

<pallas_src>
import functools

import jax
import jax.numpy as jnp
from jax.experimental import pallas as pl
from jax.experimental.pallas import tpu as pltpu

_LANE_CHOICES = (4096, 2048, 1024, 512, 256, 128)  # prefer the widest lane dim
# Inputs at or below this size run as one full-array block (bypasses the
# (8,128) divisibility rule, zero grid overhead). Anything bigger gets >= 2
# grid steps so both v7x TensorCores see work.
_SINGLE_BLOCK_MAX_BYTES = 256 * 1024


@functools.lru_cache(maxsize=None)
def _chip_config():
    """Returns (target_block_bytes, vmem_limit_bytes) for the local TPU gen."""
    kind = ""
    try:
        kind = jax.devices()[0].device_kind.lower()
    except Exception:
        pass
    if ("v7" in kind) or ("7x" in kind) or ("tpu7" in kind):
        # v7x: fast HBM makes the fixed per-step cost proportionally large at
        # 2 MiB blocks; 8 MiB blocks amortize it. 4 x 8 MiB buffers is
        # borderline vs the 32 MiB scoped default, so raise the limit.
        return 8 * 1024 * 1024, 40 * 1024 * 1024
    if "v6" in kind:
        # v6e: 4 x 4 MiB = 16 MiB < 32 MiB scoped default -> no override.
        return 4 * 1024 * 1024, None
    # v5e (scoped VMEM default is 16 MiB) and unknown chips: 2 MiB blocks ->
    # 8 MiB of pipeline buffers, safely inside 16 MiB.
    return 2 * 1024 * 1024, None


def _sublane_packing(dtype):
    # Rows-per-vreg packing of the second-minor dim: 8 (f32), 16 (bf16), 32 (8-bit).
    itemsize = jnp.dtype(dtype).itemsize
    return max(8, 32 // max(itemsize, 1))


def _sigmoid_range_kernel(params_ref, x_ref, o_ref):
    # params_ref is a (2,) SMEM ref holding [low, high] (scalar prefetch).
    low = params_ref[0]
    scale = params_ref[1] - params_ref[0]
    # f32 intermediates even for bf16 inputs (v5e EUP has no bf16 path).
    x = x_ref[...].astype(jnp.float32)
    # sigmoid(x) = 1 / (1 + exp(-x)): exp -> EUP, exact reciprocal for the
    # divide. Stable at both tails (exp -> inf => recip -> 0 => y == low).
    y = pl.reciprocal(1.0 + jnp.exp(-x)) * scale + low
    o_ref[...] = y.astype(o_ref.dtype)


def _launch(x2d, params, block_shape, index_map, grid, vmem_limit):
    return pl.pallas_call(
        _sigmoid_range_kernel,
        out_shape=jax.ShapeDtypeStruct(x2d.shape, x2d.dtype),
        grid_spec=pltpu.PrefetchScalarGridSpec(
            num_scalar_prefetch=1,          # params -> SMEM, no recompile per (low, high)
            grid=grid,
            in_specs=[pl.BlockSpec(block_shape, index_map)],
            out_specs=pl.BlockSpec(block_shape, index_map),
        ),
        compiler_params=pltpu.CompilerParams(
            # TODO(synk): verify in an xprof trace that "parallel" actually
            # shards grid steps across both v7x TensorCores; if not, switch
            # this axis to pltpu.CORE_PARALLEL.
            dimension_semantics=("parallel",),
            vmem_limit_bytes=vmem_limit,
        ),
    )(params, x2d)


def _tiled_rows_call(x2d, params, block_bytes, vmem_limit):
    """Lane-dense (rows, lane) slab, tiled along rows."""
    rows, lane = x2d.shape
    itemsize = jnp.dtype(x2d.dtype).itemsize
    pack = _sublane_packing(x2d.dtype)
    total_bytes = rows * lane * itemsize

    if total_bytes <= _SINGLE_BLOCK_MAX_BYTES or rows <= pack:
        tile_rows = rows  # single full-array block: zero grid overhead
    else:
        # Pick a (best-effort even) step count targeting ~block_bytes per block,
        # with a floor of 2 steps so the two v7x TCs both get work.
        steps = max(2, pl.cdiv(total_bytes, block_bytes))
        steps += steps % 2
        tile_rows = pl.cdiv(rows, steps)
        tile_rows = pl.cdiv(tile_rows, pack) * pack           # pack-aligned
        tile_rows = max(pack, min(tile_rows, ((rows - 1) // pack) * pack))

    grid = (pl.cdiv(rows, tile_rows),)  # ragged last block: stores auto-masked
    return _launch(x2d, params, (tile_rows, lane), lambda i, p: (i, 0), grid,
                   vmem_limit)


def _flat_call(x2d, params, block_bytes, vmem_limit):
    """(1, n) view for ragged element counts; tiled along the lane dim."""
    _, n = x2d.shape
    itemsize = jnp.dtype(x2d.dtype).itemsize

    if n * itemsize <= _SINGLE_BLOCK_MAX_BYTES or n <= 128:
        tile = n  # full-array block bypasses the 128-lane divisibility rule
    else:
        # A (1, tile) block may under-use sublanes in VMEM, so budget for the
        # worst-case 8x padding; keep >= 2 grid steps.
        max_tile_elems = max(128, (block_bytes // 8) // itemsize)
        tile = max(128, (max_tile_elems // 128) * 128)
        tile = min(tile, ((n - 1) // 128) * 128)

    grid = (pl.cdiv(n, tile),)  # ragged last lane-block: stores auto-masked
    return _launch(x2d, params, (1, tile), lambda i, p: (0, i), grid,
                   vmem_limit)


def sigmoid_range(x, low, high):
    """sigmoid(x) * (high - low) + low, elementwise, via a Pallas TPU kernel."""
    orig_shape = x.shape
    n = x.size
    if n == 0:
        return x

    # Scalars travel to SMEM via scalar prefetch (works for both Python floats
    # and traced values).
    params = jnp.asarray([low, high], dtype=jnp.float32)
    block_bytes, vmem_limit = _chip_config()

    lane = next((l for l in _LANE_CHOICES if n % l == 0), None)
    if lane is not None:
        # Row-major reshape of a contiguous array is free: no extra HBM pass,
        # and the output store is lane-dense (unmasked vst).
        out = _tiled_rows_call(x.reshape(n // lane, lane), params, block_bytes,
                               vmem_limit)
    else:
        # Ragged element count: single pass over a free (1, n) view; the final
        # block is masked on store. No jnp.pad / slice extra HBM passes.
        out = _flat_call(x.reshape(1, n), params, block_bytes, vmem_limit)
    return out.reshape(orig_shape)


if __name__ == "__main__":
    low, high = -1.0, 1.0  # SigmoidRange(low=-1.0, high=1.0)

    # Small NCHW activation map consistent with a UNet head (single-block path).
    x = jax.random.normal(jax.random.PRNGKey(0), (2, 4, 16, 16),
                          dtype=jnp.float32)
    y = jax.block_until_ready(sigmoid_range(x, low, high))
    y_ref = jax.nn.sigmoid(x) * (high - low) + low
    assert y.shape == x.shape and y.dtype == x.dtype
    assert jnp.allclose(y, y_ref, atol=1e-5, rtol=1e-5)

    # Larger input: exercises the multi-block path (grid >= 2, TC-shardable).
    x_big = jax.random.normal(jax.random.PRNGKey(1), (8, 32, 64, 64),
                              dtype=jnp.float32)
    y_big = jax.block_until_ready(sigmoid_range(x_big, low, high))
    y_big_ref = jax.nn.sigmoid(x_big) * (high - low) + low
    assert y_big.shape == x_big.shape and y_big.dtype == x_big.dtype
    assert jnp.allclose(y_big, y_big_ref, atol=1e-5, rtol=1e-5)

    # Ragged element count (3*5*11*11 = 1815, not a multiple of 128):
    # exercises the pad-free (1, n) fallback.
    x_odd = jax.random.normal(jax.random.PRNGKey(2), (3, 5, 11, 11),
                              dtype=jnp.float32)
    y_odd = jax.block_until_ready(sigmoid_range(x_odd, low, high))
    y_odd_ref = jax.nn.sigmoid(x_odd) * (high - low) + low
    assert y_odd.shape == x_odd.shape and y_odd.dtype == x_odd.dtype
    assert jnp.allclose(y_odd, y_odd_ref, atol=1e-5, rtol=1e-5)

    print("KERNEL_OK")
</pallas_src>

<mosaic_0001>
module attributes {stable_mosaic.version = 11 : i64} {
  func.func @_sigmoid_range_kernel(%arg0: i32, %arg1: memref<2xf32, #tpu.memory_space<smem>>, %arg2: memref<1x2048xf32, #tpu.memory_space<vmem>>, %arg3: memref<1x2048xf32, #tpu.memory_space<vmem>>) attributes {dimension_semantics = [#tpu.dimension_semantics<parallel>], iteration_bounds = array<i64: 1>, scalar_prefetch = 1 : i64, scratch_operands = 0 : i64, tpu.core_type = #tpu.core_type<tc>, window_params = [{transform_indices = @transform_0, window_bounds = array<i64: 1, 2048>}, {transform_indices = @transform_1, window_bounds = array<i64: 1, 2048>}]} {
    %c0 = arith.constant 0 : index
    %0 = memref.load %arg1[%c0] : memref<2xf32, #tpu.memory_space<smem>>
    %c1 = arith.constant 1 : index
    %1 = memref.load %arg1[%c1] : memref<2xf32, #tpu.memory_space<smem>>
    %c0_0 = arith.constant 0 : index
    %2 = memref.load %arg1[%c0_0] : memref<2xf32, #tpu.memory_space<smem>>
    %3 = arith.subf %1, %2 : f32
    %c0_1 = arith.constant 0 : index
    %c0_2 = arith.constant 0 : index
    %4 = vector.load %arg2[%c0_1, %c0_2] : memref<1x2048xf32, #tpu.memory_space<vmem>>, vector<1x2048xf32>
    %cst = arith.constant 0.000000e+00 : f32
    %5 = vector.broadcast %cst : f32 to vector<1x2048xf32>
    %6 = arith.subf %5, %4 : vector<1x2048xf32>
    %7 = math.exp %6 : vector<1x2048xf32>
    %cst_3 = arith.constant 1.000000e+00 : f32
    %8 = vector.broadcast %cst_3 : f32 to vector<1x2048xf32>
    %9 = arith.addf %8, %7 : vector<1x2048xf32>
    %10 = tpu.reciprocal %9 : vector<1x2048xf32> -> vector<1x2048xf32>
    %11 = vector.broadcast %3 : f32 to vector<1x2048xf32>
    %12 = arith.mulf %10, %11 : vector<1x2048xf32>
    %13 = vector.broadcast %0 : f32 to vector<1x2048xf32>
    %14 = arith.addf %12, %13 : vector<1x2048xf32>
    %c0_4 = arith.constant 0 : index
    %c0_5 = arith.constant 0 : index
    %15 = vector.load %arg3[%c0_4, %c0_5] : memref<1x2048xf32, #tpu.memory_space<vmem>>, vector<1x2048xf32>
    tpu.vector_store %arg3[%c0_4, %c0_5], %14 {strides = array<i32>} : memref<1x2048xf32, #tpu.memory_space<vmem>>, vector<1x2048xf32>,
    return
  }
  func.func @transform_0(%arg0: i32, %arg1: memref<2xf32, #tpu.memory_space<smem>>) -> (i32, i32) {
    %c0_i32 = arith.constant 0 : i32
    %c0_i32_0 = arith.constant 0 : i32
    return %arg0, %c0_i32 : i32, i32
  }
  func.func @transform_1(%arg0: i32, %arg1: memref<2xf32, #tpu.memory_space<smem>>) -> (i32, i32) {
    %c0_i32 = arith.constant 0 : i32
    %c0_i32_0 = arith.constant 0 : i32
    return %arg0, %c0_i32 : i32, i32
  }
}

</mosaic_0001>

<llo_original>
// kernel: tpu_custom_call.1
$region0: #{tpu_custom_call.1}
  #allocation0 [shape = 'u32[]', space=smem, size = 0x4, offset = 0x4, fixed_abs, tag = 'smem constant byte address 0x4 - core index']
  #allocation1 [shape = 'u32[144,128]{1,0:T(1,128)}', space=vmem, size = 0x12000, scoped, tag = 'internal scratch']
  #allocation2 [shape = 's32[1]{0}', space=sflag, size = 0x4, scoped, tag = 'scoped memory for tpu_custom_call.1']
  #allocation3 [shape = 'u8[512]{0}', space=smem, size = 0x200, scoped, tag = 'prefetched SMEM operand 0']
  %s0 = inlined_call_operand.hbm [shape: f32[2], index: 0, kind: input, shape index: {}]
  %s1 = inlined_call_operand.hbm [shape: f32[1,2048], index: 1, kind: input, shape index: {}]
  %s2 = inlined_call_operand.hbm [shape: f32[1,2048], index: 2, kind: output, shape index: {}]
  %s3 = sld [smem:[#allocation0]]
  $region18: #{tpu_custom_call.1} parent=0
    _
  %s5 = ssub.s32 1, %s3
  %s6 = scalar_select 0, %s5, %s3
  %8 = dma.hbm_to_smem %s0, 16, [#allocation3], [#allocation2]
  %9 = dma.done [#allocation2], 16
  %10 = sfence
  $region1: #{tpu_custom_call.1} parent=0
    #allocation4 [shape = 'u8[8192]{0}', space=vmem, size = 0x2000, scoped, tag = 'input window, operand 1, single buffered']
    #allocation5 [shape = 's32[1]{0}', space=sflag, size = 0x4, scoped, tag = 'scoped memory for tpu_custom_call.1']
    #allocation6 [shape = 's32[1]{0}', space=sflag, size = 0x4, scoped, tag = 'scoped memory for tpu_custom_call.1']
    #allocation7 [shape = 'u8[8192]{0}', space=vmem, size = 0x2000, scoped, tag = 'output window, operand 0, single buffered']
    %11 = vsyncpa [#allocation5], 0
    %12 = vsyncpa [#allocation6], 0
    // Predicated region
    $region2: #{tpu_custom_call.1} parent=1 // pred_check
      _
    $region3: #{tpu_custom_call.1} parent=1 // pred_check_branch
      %14 = sbr.rel (0) target = $region5
    $region4: #{tpu_custom_call.1} parent=1 // pred_region
      %s16 = ssub.s32 256, 256
      %17 = vsyncadd [#allocation5], %s16
      %s19 = sshll.u32 [#allocation4], 4
      %s20 = int_to_ptr.vmem [resolvable:$true] %s19
      %22 = dma.hbm_to_vmem [thread:$0]  %s1, 256, %s20, [#allocation5]
    $region5: #{tpu_custom_call.1} parent=1 // pred_fallthru
      _
    // Predicated region
    $region6: #{tpu_custom_call.1} parent=1 // pred_check
      _
    $region7: #{tpu_custom_call.1} parent=1 // pred_check_branch
      %24 = sbr.rel (0) target = $region9
    $region8: #{tpu_custom_call.1} parent=1 // pred_region
      %25 = dma.done [#allocation5], 256
    $region9: #{tpu_custom_call.1} parent=1 // pred_fallthru
      _
    %s26 = sld [smem:[#allocation3]]
    %s27 = sld [smem:[#allocation3 + $0x1]]
    %s28 = ssub.f32 %s27, %s26
    %v29 = vld [vmem:[#allocation4] sm:$0xff]
    %v30 = vld [vmem:[#allocation4 + $0x8] sm:$0xff]
    %v31 = vsub.f32 0.0, %v29
    %v32 = vsub.f32 0.0, %v30
    %v33 = vmul.f32 %v31, 1.442695
    %v34 = vpow.pop %v33
    %v35 = vmul.f32 %v32, 1.442695
    %v36 = vpow.pop %v35
    %v37 = vadd.f32 %v34, 1.0
    %v38 = vadd.f32 %v36, 1.0
    %v39 = vrcp.pop %v37
    %v40 = vrcp.pop %v38
    %v41 = vstv %s28
    %v42 = vmul.f32 %v39, %v41
    %v43 = vmul.f32 %v40, %v41
    %v44 = vstv %s26
    %v45 = vadd.f32 %v42, %v44
    %v46 = vadd.f32 %v43, %v44
    %47 = vst [vmem:[#allocation7] sm:$0xff] %v45
    %48 = vst [vmem:[#allocation7 + $0x8] sm:$0xff] %v46
    // Predicated region
    $region10: #{tpu_custom_call.1} parent=1 // pred_check
      _
    $region11: #{tpu_custom_call.1} parent=1 // pred_check_branch
      %50 = sbr.rel (0) target = $region13
    $region12: #{tpu_custom_call.1} parent=1 // pred_region
      %s52 = ssub.s32 256, 256
      %53 = vsyncadd [#allocation6], %s52
      %s55 = sshll.u32 [#allocation7], 4
      %s56 = int_to_ptr.vmem [resolvable:$true] %s55
      %58 = dma.vmem_to_hbm [thread:$0]  %s56, 256, %s2, [#allocation6]
    $region13: #{tpu_custom_call.1} parent=1 // pred_fallthru
      _
    // Predicated region
    $region14: #{tpu_custom_call.1} parent=1 // pred_check
      _
    $region15: #{tpu_custom_call.1} parent=1 // pred_check_branch
      %60 = sbr.rel (0) target = $region17
    $region16: #{tpu_custom_call.1} parent=1 // pred_region
      %61 = dma.done [#allocation6], 256
    $region17: #{tpu_custom_call.1} parent=1 // pred_fallthru
      _
    %62 = vsyncpa [#allocation5], 1
    %63 = vsyncpa [#allocation6], 1

</llo_original>
